<compile_context>
chip_gen: v7x
topology: tpu7x:2x2x1
jax: 0.10.0
libtpu: 0.0.40
codegen_flags: <defaults>
</compile_context>

<pallas_src>
import jax
import jax.numpy as jnp
from jax.experimental import pallas as pl
from jax.experimental.pallas import tpu as pltpu


def _round_up(n, m):
    return ((n + m - 1) // m) * m


def _generator_kernel(x_ref, w1_ref, b1_ref, w2_ref, b2_ref, w3_ref, b3_ref,
                      o_ref):
    """One batch tile of the fused Generator forward pass."""
    # In-kernel cast: x arrives f32/unpadded; MXU eats bf16.
    x = x_ref[...].astype(w1_ref.dtype)              # [BM, latent_dim] bf16

    # Layer 1: Linear(latent_dim -> 128) + ReLU  (f32 accumulate & epilogue)
    h1 = jnp.dot(x, w1_ref[...], preferred_element_type=jnp.float32)
    h1 = jnp.maximum(h1 + b1_ref[...], 0.0)

    # Layer 2: Linear(128 -> 256) + ReLU
    h2 = jnp.dot(h1.astype(w2_ref.dtype), w2_ref[...],
                 preferred_element_type=jnp.float32)
    h2 = jnp.maximum(h2 + b2_ref[...], 0.0)

    # Layer 3: Linear(256 -> out_dim) + Tanh
    h3 = jnp.dot(h2.astype(w3_ref.dtype), w3_ref[...],
                 preferred_element_type=jnp.float32)
    o_ref[...] = jnp.tanh(h3 + b3_ref[...]).astype(o_ref.dtype)


@jax.jit
def gan_forward(x, params):
    """GAN.forward(x) == generator(x).  x: [B, latent_dim] float32."""
    w1, b1, w2, b2, w3, b3 = params
    batch, latent_dim = x.shape
    h1_dim = w1.shape[1]          # 128
    h2_dim = w2.shape[1]          # 256
    out_dim = w3.shape[1]

    # Large batch tile (multiple of 8) to amortize per-step pipeline overhead;
    # VMEM use at BM=1024 is only a few MiB (x + out double buffers + f32
    # intermediates + ~160 KB of bf16 weights), far under every generation's
    # scoped-VMEM default.
    bm = min(1024, _round_up(batch, 8))
    if batch > 8:
        # Guarantee >=2 grid steps so both v7x TensorCores get work.
        bm = min(bm, _round_up(pl.cdiv(batch, 2), 8))
    grid = (pl.cdiv(batch, bm),)

    bf16 = jnp.bfloat16
    # Weight/bias casts are tiny (~160 KB total) and one pass; activations are
    # not touched on the XLA side at all.
    w1_c = w1.astype(bf16)
    w2_c = w2.astype(bf16)
    w3_c = w3.astype(bf16)
    b1_c = b1.astype(jnp.float32)
    b2_c = b2.astype(jnp.float32)
    b3_c = b3.astype(jnp.float32)

    const2d = lambda i: (0, 0)   # weights/biases: same full block every step

    flops = 2 * batch * (latent_dim * h1_dim + h1_dim * h2_dim
                         + h2_dim * out_dim)
    bytes_accessed = (
        x.size * 4                                    # x f32 read
        + (w1_c.size + w2_c.size + w3_c.size) * 2     # bf16 weights
        + (b1_c.size + b2_c.size + b3_c.size) * 4     # f32 biases
        + batch * out_dim * 4)                        # f32 output

    out = pl.pallas_call(
        _generator_kernel,
        out_shape=jax.ShapeDtypeStruct((batch, out_dim), jnp.float32),
        grid=grid,
        in_specs=[
            pl.BlockSpec((bm, latent_dim), lambda i: (i, 0)),   # x tile
            pl.BlockSpec((latent_dim, h1_dim), const2d),        # w1
            pl.BlockSpec((1, h1_dim), const2d),                 # b1
            pl.BlockSpec((h1_dim, h2_dim), const2d),            # w2
            pl.BlockSpec((1, h2_dim), const2d),                 # b2
            pl.BlockSpec((h2_dim, out_dim), const2d),           # w3
            pl.BlockSpec((1, out_dim), const2d),                # b3
        ],
        out_specs=pl.BlockSpec((bm, out_dim), lambda i: (i, 0)),
        compiler_params=pltpu.CompilerParams(
            dimension_semantics=("parallel",)),
        cost_estimate=pl.CostEstimate(
            flops=flops,
            transcendentals=batch * out_dim,
            bytes_accessed=bytes_accessed),
    )(x, w1_c, b1_c, w2_c, b2_c, w3_c, b3_c)

    return out


def init_generator_params(key, latent_dim, output_dim):
    """Deterministic init mimicking torch.nn.Linear (uniform +-1/sqrt(fan_in))."""
    def linear(key, fan_in, fan_out):
        kw, kb = jax.random.split(key)
        bound = 1.0 / jnp.sqrt(fan_in)
        w = jax.random.uniform(kw, (fan_in, fan_out), jnp.float32, -bound, bound)
        b = jax.random.uniform(kb, (1, fan_out), jnp.float32, -bound, bound)
        return w, b

    k1, k2, k3 = jax.random.split(key, 3)
    w1, b1 = linear(k1, latent_dim, 128)
    w2, b2 = linear(k2, 128, 256)
    w3, b3 = linear(k3, 256, output_dim)
    return (w1, b1, w2, b2, w3, b3)


def reference_forward_bf16(x, params):
    """Pure-JAX reference matching the kernel's bf16-in / f32-accumulate path."""
    w1, b1, w2, b2, w3, b3 = params
    bf = jnp.bfloat16
    h1 = jnp.maximum(jnp.dot(x.astype(bf), w1.astype(bf),
                             preferred_element_type=jnp.float32) + b1, 0.0)
    h2 = jnp.maximum(jnp.dot(h1.astype(bf), w2.astype(bf),
                             preferred_element_type=jnp.float32) + b2, 0.0)
    return jnp.tanh(jnp.dot(h2.astype(bf), w3.astype(bf),
                            preferred_element_type=jnp.float32) + b3)


def reference_forward_f32(x, params):
    """Full-precision reference of Generator.forward."""
    w1, b1, w2, b2, w3, b3 = params
    h1 = jnp.maximum(x @ w1 + b1, 0.0)
    h2 = jnp.maximum(h1 @ w2 + b2, 0.0)
    return jnp.tanh(h2 @ w3 + b3)


if __name__ == "__main__":
    # The CSV-derived input_dim is unknown at script time; pick a small
    # deterministic output_dim consistent with "output_dim = input_dim".
    latent_dim = 100   # matches the module's latent_dim
    output_dim = 32    # synthetic feature dimension (== input_dim)
    batch = 50         # non-multiple of the tile: exercises the ragged last block

    key = jax.random.PRNGKey(0)
    k_x, k_p = jax.random.split(key)

    z = jax.random.normal(k_x, (batch, latent_dim), jnp.float32)
    params = init_generator_params(k_p, latent_dim, output_dim)

    out = gan_forward(z, params)
    out = jax.block_until_ready(out)
    assert out.shape == (batch, output_dim)
    assert bool(jnp.all(jnp.isfinite(out)))

    ref_bf16 = reference_forward_bf16(z, params)
    assert jnp.allclose(out, ref_bf16, atol=5e-3, rtol=5e-3), \
        "mismatch vs bf16-path reference"

    ref_f32 = reference_forward_f32(z, params)
    assert jnp.allclose(out, ref_f32, atol=5e-2, rtol=5e-2), \
        "mismatch vs f32 reference"

    print("KERNEL_OK")
</pallas_src>

<mosaic_0001>
module attributes {stable_mosaic.version = 11 : i64} {
  func.func @_generator_kernel(%arg0: i32, %arg1: memref<32x100xf32, #tpu.memory_space<vmem>>, %arg2: memref<100x128xbf16, #tpu.memory_space<vmem>>, %arg3: memref<1x128xf32, #tpu.memory_space<vmem>>, %arg4: memref<128x256xbf16, #tpu.memory_space<vmem>>, %arg5: memref<1x256xf32, #tpu.memory_space<vmem>>, %arg6: memref<256x32xbf16, #tpu.memory_space<vmem>>, %arg7: memref<1x32xf32, #tpu.memory_space<vmem>>, %arg8: memref<32x32xf32, #tpu.memory_space<vmem>>) attributes {dimension_semantics = [#tpu.dimension_semantics<parallel>], iteration_bounds = array<i64: 2>, scalar_prefetch = 0 : i64, scratch_operands = 0 : i64, tpu.core_type = #tpu.core_type<tc>, window_params = [{transform_indices = @transform_0, window_bounds = array<i64: 32, 100>}, {pipeline_mode = #tpu.pipeline_mode<synchronous>, transform_indices = @transform_1, window_bounds = array<i64: 100, 128>}, {pipeline_mode = #tpu.pipeline_mode<synchronous>, transform_indices = @transform_2, window_bounds = array<i64: 1, 128>}, {pipeline_mode = #tpu.pipeline_mode<synchronous>, transform_indices = @transform_3, window_bounds = array<i64: 128, 256>}, {pipeline_mode = #tpu.pipeline_mode<synchronous>, transform_indices = @transform_4, window_bounds = array<i64: 1, 256>}, {pipeline_mode = #tpu.pipeline_mode<synchronous>, transform_indices = @transform_5, window_bounds = array<i64: 256, 32>}, {pipeline_mode = #tpu.pipeline_mode<synchronous>, transform_indices = @transform_6, window_bounds = array<i64: 1, 32>}, {transform_indices = @transform_7, window_bounds = array<i64: 32, 32>}]} {
    %c0 = arith.constant 0 : index
    %c0_0 = arith.constant 0 : index
    %0 = vector.load %arg1[%c0, %c0_0] : memref<32x100xf32, #tpu.memory_space<vmem>>, vector<32x100xf32>
    %1 = arith.truncf %0 : vector<32x100xf32> to vector<32x100xbf16>
    %c0_1 = arith.constant 0 : index
    %c0_2 = arith.constant 0 : index
    %2 = vector.load %arg2[%c0_1, %c0_2] : memref<100x128xbf16, #tpu.memory_space<vmem>>, vector<100x128xbf16>
    %cst = arith.constant dense<0.000000e+00> : vector<32x128xf32>
    %3 = tpu.matmul %1, %2, %cst {dimension_numbers = #tpu.dot_dimension_numbers<[1], [0], [0], [1], [0, 0, 1, 1], [], []>} : vector<32x100xbf16>, vector<100x128xbf16>, vector<32x128xf32> -> vector<32x128xf32>
    %c0_3 = arith.constant 0 : index
    %c0_4 = arith.constant 0 : index
    %4 = vector.load %arg3[%c0_3, %c0_4] : memref<1x128xf32, #tpu.memory_space<vmem>>, vector<1x128xf32>
    %5 = vector.broadcast %4 : vector<1x128xf32> to vector<32x128xf32>
    %6 = arith.addf %3, %5 : vector<32x128xf32>
    %cst_5 = arith.constant 0.000000e+00 : f32
    %7 = vector.broadcast %cst_5 : f32 to vector<32x128xf32>
    %8 = arith.maximumf %6, %7 : vector<32x128xf32>
    %9 = arith.truncf %8 : vector<32x128xf32> to vector<32x128xbf16>
    %c0_6 = arith.constant 0 : index
    %c0_7 = arith.constant 0 : index
    %10 = vector.load %arg4[%c0_6, %c0_7] : memref<128x256xbf16, #tpu.memory_space<vmem>>, vector<128x256xbf16>
    %cst_8 = arith.constant dense<0.000000e+00> : vector<32x256xf32>
    %11 = tpu.matmul %9, %10, %cst_8 {dimension_numbers = #tpu.dot_dimension_numbers<[1], [0], [0], [1], [0, 0, 1, 1], [], []>} : vector<32x128xbf16>, vector<128x256xbf16>, vector<32x256xf32> -> vector<32x256xf32>
    %c0_9 = arith.constant 0 : index
    %c0_10 = arith.constant 0 : index
    %12 = vector.load %arg5[%c0_9, %c0_10] : memref<1x256xf32, #tpu.memory_space<vmem>>, vector<1x256xf32>
    %13 = vector.broadcast %12 : vector<1x256xf32> to vector<32x256xf32>
    %14 = arith.addf %11, %13 : vector<32x256xf32>
    %cst_11 = arith.constant 0.000000e+00 : f32
    %15 = vector.broadcast %cst_11 : f32 to vector<32x256xf32>
    %16 = arith.maximumf %14, %15 : vector<32x256xf32>
    %17 = arith.truncf %16 : vector<32x256xf32> to vector<32x256xbf16>
    %c0_12 = arith.constant 0 : index
    %c0_13 = arith.constant 0 : index
    %18 = vector.load %arg6[%c0_12, %c0_13] : memref<256x32xbf16, #tpu.memory_space<vmem>>, vector<256x32xbf16>
    %cst_14 = arith.constant dense<0.000000e+00> : vector<32x32xf32>
    %19 = tpu.matmul %17, %18, %cst_14 {dimension_numbers = #tpu.dot_dimension_numbers<[1], [0], [0], [1], [0, 0, 1, 1], [], []>} : vector<32x256xbf16>, vector<256x32xbf16>, vector<32x32xf32> -> vector<32x32xf32>
    %c0_15 = arith.constant 0 : index
    %c0_16 = arith.constant 0 : index
    %20 = vector.load %arg7[%c0_15, %c0_16] : memref<1x32xf32, #tpu.memory_space<vmem>>, vector<1x32xf32>
    %21 = vector.broadcast %20 : vector<1x32xf32> to vector<32x32xf32>
    %22 = arith.addf %19, %21 : vector<32x32xf32>
    %23 = math.tanh %22 : vector<32x32xf32>
    %c0_17 = arith.constant 0 : index
    %c0_18 = arith.constant 0 : index
    %24 = vector.load %arg8[%c0_17, %c0_18] : memref<32x32xf32, #tpu.memory_space<vmem>>, vector<32x32xf32>
    tpu.vector_store %arg8[%c0_17, %c0_18], %23 {strides = array<i32>} : memref<32x32xf32, #tpu.memory_space<vmem>>, vector<32x32xf32>,
    return
  }
  func.func @transform_0(%arg0: i32) -> (i32, i32) {
    %c0_i32 = arith.constant 0 : i32
    %c0_i32_0 = arith.constant 0 : i32
    return %arg0, %c0_i32 : i32, i32
  }
  func.func @transform_1(%arg0: i32) -> (i32, i32) {
    %c0_i32 = arith.constant 0 : i32
    %c0_i32_0 = arith.constant 0 : i32
    %c0_i32_1 = arith.constant 0 : i32
    return %c0_i32, %c0_i32_0 : i32, i32
  }
  func.func @transform_2(%arg0: i32) -> (i32, i32) {
    %c0_i32 = arith.constant 0 : i32
    %c0_i32_0 = arith.constant 0 : i32
    %c0_i32_1 = arith.constant 0 : i32
    return %c0_i32, %c0_i32_0 : i32, i32
  }
  func.func @transform_3(%arg0: i32) -> (i32, i32) {
    %c0_i32 = arith.constant 0 : i32
    %c0_i32_0 = arith.constant 0 : i32
    %c0_i32_1 = arith.constant 0 : i32
    return %c0_i32, %c0_i32_0 : i32, i32
  }
  func.func @transform_4(%arg0: i32) -> (i32, i32) {
    %c0_i32 = arith.constant 0 : i32
    %c0_i32_0 = arith.constant 0 : i32
    %c0_i32_1 = arith.constant 0 : i32
    return %c0_i32, %c0_i32_0 : i32, i32
  }
  func.func @transform_5(%arg0: i32) -> (i32, i32) {
    %c0_i32 = arith.constant 0 : i32
    %c0_i32_0 = arith.constant 0 : i32
    %c0_i32_1 = arith.constant 0 : i32
    return %c0_i32, %c0_i32_0 : i32, i32
  }
  func.func @transform_6(%arg0: i32) -> (i32, i32) {
    %c0_i32 = arith.constant 0 : i32
    %c0_i32_0 = arith.constant 0 : i32
    %c0_i32_1 = arith.constant 0 : i32
    return %c0_i32, %c0_i32_0 : i32, i32
  }
  func.func @transform_7(%arg0: i32) -> (i32, i32) {
    %c0_i32 = arith.constant 0 : i32
    %c0_i32_0 = arith.constant 0 : i32
    return %arg0, %c0_i32 : i32, i32
  }
}

</mosaic_0001>

<llo_original>
// kernel: gan_forward.1
$region0: #{gan_forward.1}
  #allocation0 [shape = 'u32[]', space=smem, size = 0x4, offset = 0x4, fixed_abs, tag = 'smem constant byte address 0x4 - core index']
  #allocation1 [shape = 'u32[144,128]{1,0:T(1,128)}', space=vmem, size = 0x12000, scoped, tag = 'internal scratch']
  %s0 = inlined_call_operand.vmem [shape: f32[50,100], index: 0, kind: input, shape index: {}]
  %s1 = inlined_call_operand.vmem [shape: bf16[100,128], index: 1, kind: input, shape index: {}]
  %s2 = inlined_call_operand.vmem [shape: f32[1,128], index: 2, kind: input, shape index: {}]
  %s3 = inlined_call_operand.vmem [shape: bf16[128,256], index: 3, kind: input, shape index: {}]
  %s4 = inlined_call_operand.vmem [shape: f32[1,256], index: 4, kind: input, shape index: {}]
  %s5 = inlined_call_operand.vmem [shape: bf16[256,32], index: 5, kind: input, shape index: {}]
  %s6 = inlined_call_operand.vmem [shape: f32[1,32], index: 6, kind: input, shape index: {}]
  %s7 = inlined_call_operand.vmem [shape: f32[50,32], index: 7, kind: output, shape index: {}]
  %s8 = sld [smem:[#allocation0]]
  $region109: #{gan_forward.1} parent=0
    _
  %s10 = ssub.s32 1, %s8
  %s11 = scalar_select 0, %s10, %s8
  $region1: #{gan_forward.1} parent=0
    #allocation2 [shape = 'u8[32768]{0}', space=vmem, size = 0x8000, scoped, tag = 'output window, operand 0']
    loop: start=0, step=1, limit=4
    $region2: #{gan_forward.1} parent=1 // loop_pre_header
      _
    $region3: #{gan_forward.1} parent=1 // loop_header
      %s13 = sphi 0, %s17
      %p14 = scmp.ge.s32.totalorder %s13, 4
      %s23 = sphi 0, %s25
      %s26 = sphi 0, %s23
      %s27 = sphi 0, %s26
      %s43 = sphi 0, %s27
      %s47 = sphi 0, %s47
      %s49 = sphi 0, %s47
      %s50 = sphi 0, %s49
      %s64 = sphi 0, %s50
      %s68 = sphi 0, %s68
      %s70 = sphi 0, %s68
      %s71 = sphi 0, %s70
      %s85 = sphi 0, %s71
      %s89 = sphi 0, %s89
      %s91 = sphi 0, %s89
      %s92 = sphi 0, %s91
      %s106 = sphi 0, %s92
      %s110 = sphi 0, %s110
      %s112 = sphi 0, %s110
      %s113 = sphi 0, %s112
      %s127 = sphi 0, %s113
      %s131 = sphi 0, %s131
      %s133 = sphi 0, %s131
      %s134 = sphi 0, %s133
      %s148 = sphi 0, %s134
      %s152 = sphi 0, %s152
      %s154 = sphi 0, %s152
      %s155 = sphi 0, %s154
      %s169 = sphi 0, %s155
      %s175 = sphi 0, %s177
      %s178 = sphi 0, %s175
      %s179 = sphi 0, %s178
      %s195 = sphi 0, %s179
    $region4: #{gan_forward.1} parent=1 // loop_header_branch
      %16 = sbr.rel (%p14) target = $region8
    $region5: #{gan_forward.1} parent=1 // loop_body
      %s18 = ssub.s32 %s13, 1
      %s19 = ssub.s32 %s13, 2
      %s20 = sadd.s32 %s13, 1
      %s21 = ssub.s32 %s13, %s20
      %p22 = scmp.eq.s32.totalorder %s21, 0
      %s24 = sadd.s32 %s23, 1
      %s25 = scalar_select %p22, %s23, %s24
      %p28 = pneg %p22
      %p29 = scmp.eq.s32.totalorder %s13, 1
      %p30 = por %p28, %p29
      %p31 = scmp.ne.s32.totalorder %s23, %s26
      %p32 = scmp.eq.s32.totalorder %s13, 0
      %p33 = por %p31, %p32
      %p34 = scmp.ne.s32.totalorder %s23, %s26
      %p35 = scmp.eq.s32.totalorder %s18, 1
      %p36 = por %p34, %p35
      %p37 = scmp.ne.s32.totalorder %s26, %s27
      %p38 = scmp.eq.s32.totalorder %s18, 0
      %p39 = por %p37, %p38
      %p40 = scmp.ne.s32.totalorder %s26, %s27
      %p41 = scmp.eq.s32.totalorder %s19, 1
      %p42 = por %p40, %p41
      %p44 = scmp.ne.s32.totalorder %s27, %s43
      %p45 = scmp.eq.s32.totalorder %s19, 0
      %p46 = por %p44, %p45
      %s48 = sadd.s32 %s47, 1
      %p51 = scmp.eq.s32.totalorder %s13, 1
      %p52 = scmp.ne.s32.totalorder %s47, %s49
      %p53 = scmp.eq.s32.totalorder %s13, 0
      %p54 = por %p52, %p53
      %p55 = scmp.ne.s32.totalorder %s47, %s49
      %p56 = scmp.eq.s32.totalorder %s18, 1
      %p57 = por %p55, %p56
      %p58 = scmp.ne.s32.totalorder %s49, %s50
      %p59 = scmp.eq.s32.totalorder %s18, 0
      %p60 = por %p58, %p59
      %p61 = scmp.ne.s32.totalorder %s49, %s50
      %p62 = scmp.eq.s32.totalorder %s19, 1
      %p63 = por %p61, %p62
      %p65 = scmp.ne.s32.totalorder %s50, %s64
      %p66 = scmp.eq.s32.totalorder %s19, 0
      %p67 = por %p65, %p66
      %s69 = sadd.s32 %s68, 1
      %p72 = scmp.eq.s32.totalorder %s13, 1
      %p73 = scmp.ne.s32.totalorder %s68, %s70
      %p74 = scmp.eq.s32.totalorder %s13, 0
      %p75 = por %p73, %p74
      %p76 = scmp.ne.s32.totalorder %s68, %s70
      %p77 = scmp.eq.s32.totalorder %s18, 1
      %p78 = por %p76, %p77
      %p79 = scmp.ne.s32.totalorder %s70, %s71
      %p80 = scmp.eq.s32.totalorder %s18, 0
      %p81 = por %p79, %p80
      %p82 = scmp.ne.s32.totalorder %s70, %s71
      %p83 = scmp.eq.s32.totalorder %s19, 1
      %p84 = por %p82, %p83
      %p86 = scmp.ne.s32.totalorder %s71, %s85
      %p87 = scmp.eq.s32.totalorder %s19, 0
      %p88 = por %p86, %p87
      %s90 = sadd.s32 %s89, 1
      %p93 = scmp.eq.s32.totalorder %s13, 1
      %p94 = scmp.ne.s32.totalorder %s89, %s91
      %p95 = scmp.eq.s32.totalorder %s13, 0
      %p96 = por %p94, %p95
      %p97 = scmp.ne.s32.totalorder %s89, %s91
      %p98 = scmp.eq.s32.totalorder %s18, 1
      %p99 = por %p97, %p98
      %p100 = scmp.ne.s32.totalorder %s91, %s92
      %p101 = scmp.eq.s32.totalorder %s18, 0
      %p102 = por %p100, %p101
      %p103 = scmp.ne.s32.totalorder %s91, %s92
      %p104 = scmp.eq.s32.totalorder %s19, 1
      %p105 = por %p103, %p104
      %p107 = scmp.ne.s32.totalorder %s92, %s106
      %p108 = scmp.eq.s32.totalorder %s19, 0
      %p109 = por %p107, %p108
      %s111 = sadd.s32 %s110, 1
      %p114 = scmp.eq.s32.totalorder %s13, 1
      %p115 = scmp.ne.s32.totalorder %s110, %s112
      %p116 = scmp.eq.s32.totalorder %s13, 0
      %p117 = por %p115, %p116
      %p118 = scmp.ne.s32.totalorder %s110, %s112
      %p119 = scmp.eq.s32.totalorder %s18, 1
      %p120 = por %p118, %p119
      %p121 = scmp.ne.s32.totalorder %s112, %s113
      %p122 = scmp.eq.s32.totalorder %s18, 0
      %p123 = por %p121, %p122
      %p124 = scmp.ne.s32.totalorder %s112, %s113
      %p125 = scmp.eq.s32.totalorder %s19, 1
      %p126 = por %p124, %p125
      %p128 = scmp.ne.s32.totalorder %s113, %s127
      %p129 = scmp.eq.s32.totalorder %s19, 0
      %p130 = por %p128, %p129
      %s132 = sadd.s32 %s131, 1
      %p135 = scmp.eq.s32.totalorder %s13, 1
      %p136 = scmp.ne.s32.totalorder %s131, %s133
      %p137 = scmp.eq.s32.totalorder %s13, 0
      %p138 = por %p136, %p137
      %p139 = scmp.ne.s32.totalorder %s131, %s133
      %p140 = scmp.eq.s32.totalorder %s18, 1
      %p141 = por %p139, %p140
      %p142 = scmp.ne.s32.totalorder %s133, %s134
      %p143 = scmp.eq.s32.totalorder %s18, 0
      %p144 = por %p142, %p143
      %p145 = scmp.ne.s32.totalorder %s133, %s134
      %p146 = scmp.eq.s32.totalorder %s19, 1
      %p147 = por %p145, %p146
      %p149 = scmp.ne.s32.totalorder %s134, %s148
      %p150 = scmp.eq.s32.totalorder %s19, 0
      %p151 = por %p149, %p150
      %s153 = sadd.s32 %s152, 1
      %p156 = scmp.eq.s32.totalorder %s13, 1
      %p157 = scmp.ne.s32.totalorder %s152, %s154
      %p158 = scmp.eq.s32.totalorder %s13, 0
      %p159 = por %p157, %p158
      %p160 = scmp.ne.s32.totalorder %s152, %s154
      %p161 = scmp.eq.s32.totalorder %s18, 1
      %p162 = por %p160, %p161
      %p163 = scmp.ne.s32.totalorder %s154, %s155
      %p164 = scmp.eq.s32.totalorder %s18, 0
      %p165 = por %p163, %p164
      %p166 = scmp.ne.s32.totalorder %s154, %s155
      %p167 = scmp.eq.s32.totalorder %s19, 1
      %p168 = por %p166, %p167
      %p170 = scmp.ne.s32.totalorder %s155, %s169
      %p171 = scmp.eq.s32.totalorder %s19, 0
      %p172 = por %p170, %p171
      %s173 = ssub.s32 %s13, %s20
      %p174 = scmp.eq.s32.totalorder %s173, 0
      %s176 = sadd.s32 %s175, 1
      %s177 = scalar_select %p174, %s175, %s176
      %p180 = pneg %p174
      %p181 = scmp.eq.s32.totalorder %s13, 1
      %p182 = por %p180, %p181
      %p183 = scmp.ne.s32.totalorder %s175, %s178
      %p184 = scmp.eq.s32.totalorder %s13, 0
      %p185 = por %p183, %p184
      %p186 = scmp.ne.s32.totalorder %s175, %s178
      %p187 = scmp.eq.s32.totalorder %s18, 1
      %p188 = por %p186, %p187
      %p189 = scmp.ne.s32.totalorder %s178, %s179
      %p190 = scmp.eq.s32.totalorder %s18, 0
      %p191 = por %p189, %p190
      %p192 = scmp.ne.s32.totalorder %s178, %s179
      %p193 = scmp.eq.s32.totalorder %s19, 1
      %p194 = por %p192, %p193
      %p196 = scmp.ne.s32.totalorder %s179, %s195
      %p197 = scmp.eq.s32.totalorder %s19, 0
      %p198 = por %p196, %p197
      %p199 = scmp.le.s32.totalorder 1, %s13
      %p200 = scmp.lt.s32.totalorder %s13, 3
      %p201 = pnand %p199, %p200
      %p202 = pneg %p201
      // Predicated region
      $region9: #{gan_forward.1} parent=5 // pred_check
        _
      $region10: #{gan_forward.1} parent=5 // pred_check_branch
        %204 = sbr.rel (%p201) target = $region12
      $region11: #{gan_forward.1} parent=5 // pred_region
        %s205 = ssub.s32 %s13, 1
        // Predicated region
        $region13: #{gan_forward.1} parent=11 // pred_check
          %p206 = pneg %p60
        $region14: #{gan_forward.1} parent=11 // pred_check_branch
          %208 = sbr.rel (%p206) target = $region16
        $region15: #{gan_forward.1} parent=11 // pred_region
          _
        $region16: #{gan_forward.1} parent=11 // pred_fallthru
          _
        // Predicated region
        $region17: #{gan_forward.1} parent=11 // pred_check
          %p209 = pneg %p81
        $region18: #{gan_forward.1} parent=11 // pred_check_branch
          %211 = sbr.rel (%p209) target = $region20
        $region19: #{gan_forward.1} parent=11 // pred_region
          _
        $region20: #{gan_forward.1} parent=11 // pred_fallthru
          _
        // Predicated region
        $region21: #{gan_forward.1} parent=11 // pred_check
          %p212 = pneg %p102
        $region22: #{gan_forward.1} parent=11 // pred_check_branch
          %214 = sbr.rel (%p212) target = $region24
        $region23: #{gan_forward.1} parent=11 // pred_region
          _
        $region24: #{gan_forward.1} parent=11 // pred_fallthru
          _
        // Predicated region
        $region25: #{gan_forward.1} parent=11 // pred_check
          %p215 = pneg %p123
        $region26: #{gan_forward.1} parent=11 // pred_check_branch
          %217 = sbr.rel (%p215) target = $region28
        $region27: #{gan_forward.1} parent=11 // pred_region
          _
        $region28: #{gan_forward.1} parent=11 // pred_fallthru
          _
        // Predicated region
        $region29: #{gan_forward.1} parent=11 // pred_check
          %p218 = pneg %p144
        $region30: #{gan_forward.1} parent=11 // pred_check_branch
          %220 = sbr.rel (%p218) target = $region32
        $region31: #{gan_forward.1} parent=11 // pred_region
          _
        $region32: #{gan_forward.1} parent=11 // pred_fallthru
          _
        // Predicated region
        $region33: #{gan_forward.1} parent=11 // pred_check
          %p221 = pneg %p165
        $region34: #{gan_forward.1} parent=11 // pred_check_branch
          %223 = sbr.rel (%p221) target = $region36
        $region35: #{gan_forward.1} parent=11 // pred_region
          _
        $region36: #{gan_forward.1} parent=11 // pred_fallthru
          _
      $region12: #{gan_forward.1} parent=5 // pred_fallthru
        _
      %p224 = scmp.lt.s32.totalorder %s13, 2
      // Predicated region
      $region37: #{gan_forward.1} parent=5 // pred_check
        %p225 = pneg %p224
      $region38: #{gan_forward.1} parent=5 // pred_check_branch
        %227 = sbr.rel (%p225) target = $region40
      $region39: #{gan_forward.1} parent=5 // pred_region
        // Predicated region
        $region41: #{gan_forward.1} parent=39 // pred_check
          %p228 = pneg %p33
        $region42: #{gan_forward.1} parent=39 // pred_check_branch
          %230 = sbr.rel (%p228) target = $region44
        $region43: #{gan_forward.1} parent=39 // pred_region
          %s231 = smul.u32 4, %s13
          %s232 = ssub.s32 7, %s231
          %p233 = scmp.lt.s32.totalorder %s232, 4
          %s234 = scalar_select %p233, %s232, 4
          %s235 = smul.u32 128, %s234
          %p236 = scmp.lt.s32.totalorder %s231, 6
          %s237 = scalar_select %p236, %s231, 6
          %s238 = smul.addr %s237, 8
          %s239 = scalar_lea.vmem %s0, %s238
          %s240 = smul.u32 4, %s13
          %s241 = ssub.s32 7, %s240
          %p242 = scmp.lt.s32.totalorder %s241, 4
          %s243 = scalar_select %p242, %s241, 4
          %s244 = smul.u32 128, %s243
        $region44: #{gan_forward.1} parent=39 // pred_fallthru
          _
      $region40: #{gan_forward.1} parent=5 // pred_fallthru
        _
      %p245 = scmp.le.s32.totalorder 1, %s13
      %p246 = scmp.lt.s32.totalorder %s13, 3
      %p247 = pnand %p245, %p246
      %p248 = pneg %p247
      // Predicated region
      $region45: #{gan_forward.1} parent=5 // pred_check
        _
      $region46: #{gan_forward.1} parent=5 // pred_check_branch
        %250 = sbr.rel (%p247) target = $region48
      $region47: #{gan_forward.1} parent=5 // pred_region
        %s251 = ssub.s32 %s13, 1
        %s252 = smul.u32 4, %s18
        %s253 = ssub.s32 7, %s252
        %p254 = scmp.lt.s32.totalorder %s253, 4
        %s255 = scalar_select %p254, %s253, 4
        %s256 = smul.u32 128, %s255
        %p257 = scmp.lt.s32.totalorder %s252, 6
        %s258 = scalar_select %p257, %s252, 6
        %s259 = smul.addr %s258, 8
        %s260 = scalar_lea.vmem %s0, %s259
        %p261 = pneg %p39
        %p262 = pneg %p36
        %p263 = pneg %p60
        %p264 = pneg %p57
        %p265 = pneg %p81
        %p266 = pneg %p78
        %p267 = pneg %p102
        %p268 = pneg %p99
        %p269 = pneg %p123
        %p270 = pneg %p120
        %p271 = pneg %p144
        %p272 = pneg %p141
        %p273 = pneg %p165
        %p274 = pneg %p162
        %p275 = pneg %p191
        %p276 = pneg %p188
        %s277 = sand.u32 %s178, 1
        %s278 = sand.u32 %s178, 1
        %s279 = smul.addr %s278, 32
        %s280 = scalar_lea.vmem [#allocation2], %s279
        %s281 = smul.u32 4, %s18
        %s282 = ssub.s32 7, %s281
        %p283 = scmp.lt.s32.totalorder %s282, 4
        %s284 = scalar_select %p283, %s282, 4
        %s285 = smul.u32 128, %s284
        %p286 = scmp.lt.s32.totalorder %s281, 6
        %s287 = scalar_select %p286, %s281, 6
        %s288 = smul.addr %s287, 8
        %s289 = scalar_lea.vmem %s0, %s288
        %s290 = smul.u32 4, %s18
        %s291 = ssub.s32 7, %s290
        %p292 = scmp.lt.s32.totalorder %s291, 4
        %s293 = scalar_select %p292, %s291, 4
        %s294 = smul.u32 128, %s293
        %s295 = smul.u32 4, %s18
        %s296 = ssub.s32 7, %s295
        %p297 = scmp.lt.s32.totalorder %s296, 4
        %s298 = scalar_select %p297, %s296, 4
        %s299 = smul.u32 128, %s298
        %v301 = vld [vmem:[%s289] sm:$0xff]
        %v302 = vld [vmem:[%s289 + $0x8] sm:$0xff]
        %v303 = vld [vmem:[%s289 + $0x10] sm:$0xff]
        %v304 = vld [vmem:[%s289 + $0x18] sm:$0xff]
        %v305 = vpack.c.bf16 %v302, %v301
        %v306 = vpack.c.bf16 %v304, %v303
        %v307 = vld [vmem:[%s1] sm:$0xf]
        %v308 = vld [vmem:[%s1 + $0x4] sm:$0xf]
        %v309 = vld [vmem:[%s1 + $0x8] sm:$0xf]
        %v310 = vld [vmem:[%s1 + $0xc] sm:$0xf]
        %v311 = vld [vmem:[%s1 + $0x10] sm:$0xf]
        %v312 = vld [vmem:[%s1 + $0x14] sm:$0xf]
        %v313 = vld [vmem:[%s1 + $0x18] sm:$0xf]
        %v314 = vld [vmem:[%s1 + $0x1c] sm:$0xf]
        %v315 = vld [vmem:[%s1 + $0x20] sm:$0xf]
        %v316 = vld [vmem:[%s1 + $0x24] sm:$0xf]
        %v317 = vld [vmem:[%s1 + $0x28] sm:$0xf]
        %v318 = vld [vmem:[%s1 + $0x2c] sm:$0xf]
        %v319 = vld [vmem:[%s1 + $0x30] sm:$0x3]
        %v320 = vld [vmem:[%s2] sm:$0x1]
        %v322 = vlaneseq
        %v323 = vshrl.u32 %v322, 7
        %v324 = vsub.s32 0, %v323
        %v325 = vrot.slane %v320, %v324
        %v340 = vunpack.c.l.b16 %v307
        %v341 = vunpack.c.l.b16 %v308
        %v342 = vunpack.c.l.b16 %v309
        %v343 = vunpack.c.l.b16 %v310
        %v344 = vunpack.c.l.b16 %v311
        %v345 = vunpack.c.l.b16 %v312
        %v346 = vunpack.c.l.b16 %v313
        %v347 = vunpack.c.l.b16 %v314
        %v348 = vunpack.c.l.b16 %v315
        %v349 = vunpack.c.l.b16 %v316
        %v350 = vunpack.c.l.b16 %v317
        %v351 = vunpack.c.l.b16 %v318
        %v352 = vunpack.c.l.b16 %v319
        %v353 = vpack.c.b16 %v341, %v340
        %v354 = vpack.c.b16 %v343, %v342
        %v355 = vpack.c.b16 %v345, %v344
        %v356 = vpack.c.b16 %v347, %v346
        %v357 = vpack.c.b16 %v349, %v348
        %v358 = vpack.c.b16 %v351, %v350
        %v359 = vpack.c.b16 %v352, %v352
        %vm366 = vcmask 818176
        %v368 = vsel %vm366, %v305, 0
        %v371 = vsel %vm366, %v306, 0
        %vm373 = vcmask 1041408
        %v375 = vsel %vm373, %v359, 0
        %377 = vmatprep.subr.bf16.mxu0 0
        %378 = vmatpush1.bf16.msra.mxu0 %v353
        %379 = vmatprep.subr.bf16.mxu0 0
        %380 = vmatpush1.bf16.msra.mxu0 %v354
        %381 = vmatprep.subr.bf16.mxu0 0
        %382 = vmatpush1.bf16.msra.mxu0 %v355
        %383 = vmatprep.subr.bf16.mxu0 0
        %384 = vmatpush1.bf16.msra.mxu0 %v356
        %385 = vmatprep.subr.bf16.mxu0 0
        %386 = vmatpush1.bf16.msra.mxu0 %v357
        %387 = vmatprep.subr.bf16.mxu0 0
        %388 = vmatpush1.bf16.msra.mxu0 %v358
        %389 = vmatprep.subr.bf16.mxu0 0
        %390 = vmatpush1.bf16.msra.mxu0 %v375
        %391 = vmatprep.subr.bf16.mxu0 0
        %392 = vmatpush1.bf16.msra.mxu0 0
        %393 = vmatprep.subr.bf16.mxu0 0
        %394 = vmatpush1.bf16.msra.mxu0 0
        %395 = vmatprep.subr.bf16.mxu0 0
        %396 = vmatpush1.bf16.msra.mxu0 0
        %397 = vmatprep.subr.bf16.mxu0 0
        %398 = vmatpush1.bf16.msra.mxu0 0
        %399 = vmatprep.subr.bf16.mxu0 0
        %400 = vmatpush1.bf16.msra.mxu0 0
        %401 = vmatprep.subr.bf16.mxu0 0
        %402 = vmatpush1.bf16.msra.mxu0 0
        %403 = vmatprep.subr.bf16.mxu0 0
        %404 = vmatpush1.bf16.msra.mxu0 0
        %405 = vmatprep.subr.bf16.mxu0 0
        %406 = vmatpush1.bf16.msra.mxu0 0
        %407 = vmatprep.subr.bf16.mxu0 0
        %408 = vmatpush1.bf16.msra.mxu0 0
        %409 = vmatprep.mubr.bf16.mxu0 0
        %410 = vmatmul.mubr.bf16.gmra.mrb[0].mxu0 %v368
        %v411 = vpop.f32.mrb[0].mxu0
        %v412 = vadd.f32 %v325, %v411
        %v413 = vpop.f32.mrb[0].mxu0
        %v414 = vpop.f32.mrb[0].mxu0
        %v415 = vadd.f32 %v325, %v414
        %v416 = vpop.f32.mrb[0].mxu0
        %417 = vmatprep.mubr.bf16.mxu0 0
        %418 = vmatmul.mubr.bf16.gmra.mrb[0].mxu0 %v371
        %v419 = vpop.f32.mrb[0].mxu0
        %v420 = vadd.f32 %v325, %v419
        %v421 = vpop.f32.mrb[0].mxu0
        %v422 = vpop.f32.mrb[0].mxu0
        %v423 = vadd.f32 %v325, %v422
        %v424 = vpop.f32.mrb[0].mxu0
        %425 = vdwg.mxu0
        %v426 = vmax.f32 %v412, 0.0
        %v427 = vmax.f32 %v415, 0.0
        %v428 = vmax.f32 %v420, 0.0
        %v429 = vmax.f32 %v423, 0.0
        %v430 = vpack.c.bf16 %v427, %v426
        %v431 = vpack.c.bf16 %v429, %v428
        %v432 = vld [vmem:[%s3] sm:$0xff]
        %v433 = vld [vmem:[%s3 + $0x8] sm:$0xff]
        %v434 = vld [vmem:[%s3 + $0x10] sm:$0xff]
        %v435 = vld [vmem:[%s3 + $0x18] sm:$0xff]
        %v436 = vld [vmem:[%s3 + $0x20] sm:$0xff]
        %v437 = vld [vmem:[%s3 + $0x28] sm:$0xff]
        %v438 = vld [vmem:[%s3 + $0x30] sm:$0xff]
        %v439 = vld [vmem:[%s3 + $0x38] sm:$0xff]
        %v440 = vld [vmem:[%s3 + $0x40] sm:$0xff]
        %v441 = vld [vmem:[%s3 + $0x48] sm:$0xff]
        %v442 = vld [vmem:[%s3 + $0x50] sm:$0xff]
        %v443 = vld [vmem:[%s3 + $0x58] sm:$0xff]
        %v444 = vld [vmem:[%s3 + $0x60] sm:$0xff]
        %v445 = vld [vmem:[%s3 + $0x68] sm:$0xff]
        %v446 = vld [vmem:[%s3 + $0x70] sm:$0xff]
        %v447 = vld [vmem:[%s3 + $0x78] sm:$0xff]
        %v448 = vld [vmem:[%s4] sm:$0x3]
        %v450 = vlaneseq
        %v451 = vshrl.u32 %v450, 7
        %v452 = vsub.s32 0, %v451
        %v453 = vrot.slane %v448, %v452
        %v454 = vlaneseq
        %v455 = vshrl.u32 %v454, 7
        %v456 = vsub.s32 1, %v455
        %v457 = vrot.slane %v448, %v456
        %v476 = vunpack.c.l.b16 %v432
        %v477 = vunpack.c.h.b16 %v432
        %v478 = vunpack.c.l.b16 %v433
        %v479 = vunpack.c.h.b16 %v433
        %v480 = vunpack.c.l.b16 %v434
        %v481 = vunpack.c.h.b16 %v434
        %v482 = vunpack.c.l.b16 %v435
        %v483 = vunpack.c.h.b16 %v435
        %v484 = vunpack.c.l.b16 %v436
        %v485 = vunpack.c.h.b16 %v436
        %v486 = vunpack.c.l.b16 %v437
        %v487 = vunpack.c.h.b16 %v437
        %v488 = vunpack.c.l.b16 %v438
        %v489 = vunpack.c.h.b16 %v438
        %v490 = vunpack.c.l.b16 %v439
        %v491 = vunpack.c.h.b16 %v439
        %v492 = vunpack.c.l.b16 %v440
        %v493 = vunpack.c.h.b16 %v440
        %v494 = vunpack.c.l.b16 %v441
        %v495 = vunpack.c.h.b16 %v441
        %v496 = vunpack.c.l.b16 %v442
        %v497 = vunpack.c.h.b16 %v442
        %v498 = vunpack.c.l.b16 %v443
        %v499 = vunpack.c.h.b16 %v443
        %v500 = vunpack.c.l.b16 %v444
        %v501 = vunpack.c.h.b16 %v444
        %v502 = vunpack.c.l.b16 %v445
        %v503 = vunpack.c.h.b16 %v445
        %v504 = vunpack.c.l.b16 %v446
        %v505 = vunpack.c.h.b16 %v446
        %v506 = vunpack.c.l.b16 %v447
        %v507 = vunpack.c.h.b16 %v447
        %v508 = vpack.c.b16 %v478, %v476
        %v509 = vpack.c.b16 %v479, %v477
        %v510 = vpack.c.b16 %v482, %v480
        %v511 = vpack.c.b16 %v483, %v481
        %v512 = vpack.c.b16 %v486, %v484
        %v513 = vpack.c.b16 %v487, %v485
        %v514 = vpack.c.b16 %v490, %v488
        %v515 = vpack.c.b16 %v491, %v489
        %v516 = vpack.c.b16 %v494, %v492
        %v517 = vpack.c.b16 %v495, %v493
        %v518 = vpack.c.b16 %v498, %v496
        %v519 = vpack.c.b16 %v499, %v497
        %v520 = vpack.c.b16 %v502, %v500
        %v521 = vpack.c.b16 %v503, %v501
        %v522 = vpack.c.b16 %v506, %v504
        %v523 = vpack.c.b16 %v507, %v505
        %540 = vmatprep.subr.bf16.mxu0 %v509
        %541 = vmatpush1.bf16.msra.mxu0 %v508
        %542 = vmatprep.subr.bf16.mxu0 %v511
        %543 = vmatpush1.bf16.msra.mxu0 %v510
        %544 = vmatprep.subr.bf16.mxu0 %v513
        %545 = vmatpush1.bf16.msra.mxu0 %v512
        %546 = vmatprep.subr.bf16.mxu0 %v515
        %547 = vmatpush1.bf16.msra.mxu0 %v514
        %548 = vmatprep.subr.bf16.mxu0 %v517
        %549 = vmatpush1.bf16.msra.mxu0 %v516
        %550 = vmatprep.subr.bf16.mxu0 %v519
        %551 = vmatpush1.bf16.msra.mxu0 %v518
        %552 = vmatprep.subr.bf16.mxu0 %v521
        %553 = vmatpush1.bf16.msra.mxu0 %v520
        %554 = vmatprep.subr.bf16.mxu0 %v523
        %555 = vmatpush1.bf16.msra.mxu0 %v522
        %556 = vmatprep.subr.bf16.mxu0 0
        %557 = vmatpush1.bf16.msra.mxu0 0
        %558 = vmatprep.subr.bf16.mxu0 0
        %559 = vmatpush1.bf16.msra.mxu0 0
        %560 = vmatprep.subr.bf16.mxu0 0
        %561 = vmatpush1.bf16.msra.mxu0 0
        %562 = vmatprep.subr.bf16.mxu0 0
        %563 = vmatpush1.bf16.msra.mxu0 0
        %564 = vmatprep.subr.bf16.mxu0 0
        %565 = vmatpush1.bf16.msra.mxu0 0
        %566 = vmatprep.subr.bf16.mxu0 0
        %567 = vmatpush1.bf16.msra.mxu0 0
        %568 = vmatprep.subr.bf16.mxu0 0
        %569 = vmatpush1.bf16.msra.mxu0 0
        %570 = vmatprep.subr.bf16.mxu0 0
        %571 = vmatpush1.bf16.msra.mxu0 0
        %572 = vmatprep.mubr.bf16.mxu0 0
        %573 = vmatmul.mubr.bf16.gmra.mrb[0].mxu0 %v430
        %v574 = vpop.f32.mrb[0].mxu0
        %v575 = vadd.f32 %v453, %v574
        %v576 = vpop.f32.mrb[0].mxu0
        %v577 = vadd.f32 %v457, %v576
        %v578 = vpop.f32.mrb[0].mxu0
        %v579 = vadd.f32 %v453, %v578
        %v580 = vpop.f32.mrb[0].mxu0
        %v581 = vadd.f32 %v457, %v580
        %582 = vmatprep.mubr.bf16.mxu0 0
        %583 = vmatmul.mubr.bf16.gmra.mrb[0].mxu0 %v431
        %v584 = vpop.f32.mrb[0].mxu0
        %v585 = vadd.f32 %v453, %v584
        %v586 = vpop.f32.mrb[0].mxu0
        %v587 = vadd.f32 %v457, %v586
        %v588 = vpop.f32.mrb[0].mxu0
        %v589 = vadd.f32 %v453, %v588
        %v590 = vpop.f32.mrb[0].mxu0
        %v591 = vadd.f32 %v457, %v590
        %592 = vdwg.mxu0
        %v593 = vmax.f32 %v575, 0.0
        %v594 = vmax.f32 %v577, 0.0
        %v595 = vmax.f32 %v579, 0.0
        %v596 = vmax.f32 %v581, 0.0
        %v597 = vmax.f32 %v585, 0.0
        %v598 = vmax.f32 %v587, 0.0
        %v599 = vmax.f32 %v589, 0.0
        %v600 = vmax.f32 %v591, 0.0
        %v601 = vpack.c.bf16 %v595, %v593
        %v602 = vpack.c.bf16 %v596, %v594
        %v603 = vpack.c.bf16 %v599, %v597
        %v604 = vpack.c.bf16 %v600, %v598
        %v605 = vld [vmem:[%s5] sm:$0xf]
        %v606 = vld [vmem:[%s5 + $0x4] sm:$0xf]
        %v607 = vld [vmem:[%s5 + $0x8] sm:$0xf]
        %v608 = vld [vmem:[%s5 + $0xc] sm:$0xf]
        %v609 = vld [vmem:[%s5 + $0x10] sm:$0xf]
        %v610 = vld [vmem:[%s5 + $0x14] sm:$0xf]
        %v611 = vld [vmem:[%s5 + $0x18] sm:$0xf]
        %v612 = vld [vmem:[%s5 + $0x1c] sm:$0xf]
        %v613 = vld [vmem:[%s5 + $0x20] sm:$0xf]
        %v614 = vld [vmem:[%s5 + $0x24] sm:$0xf]
        %v615 = vld [vmem:[%s5 + $0x28] sm:$0xf]
        %v616 = vld [vmem:[%s5 + $0x2c] sm:$0xf]
        %v617 = vld [vmem:[%s5 + $0x30] sm:$0xf]
        %v618 = vld [vmem:[%s5 + $0x34] sm:$0xf]
        %v619 = vld [vmem:[%s5 + $0x38] sm:$0xf]
        %v620 = vld [vmem:[%s5 + $0x3c] sm:$0xf]
        %v621 = vld [vmem:[%s5 + $0x40] sm:$0xf]
        %v622 = vld [vmem:[%s5 + $0x44] sm:$0xf]
        %v623 = vld [vmem:[%s5 + $0x48] sm:$0xf]
        %v624 = vld [vmem:[%s5 + $0x4c] sm:$0xf]
        %v625 = vld [vmem:[%s5 + $0x50] sm:$0xf]
        %v626 = vld [vmem:[%s5 + $0x54] sm:$0xf]
        %v627 = vld [vmem:[%s5 + $0x58] sm:$0xf]
        %v628 = vld [vmem:[%s5 + $0x5c] sm:$0xf]
        %v629 = vld [vmem:[%s5 + $0x60] sm:$0xf]
        %v630 = vld [vmem:[%s5 + $0x64] sm:$0xf]
        %v631 = vld [vmem:[%s5 + $0x68] sm:$0xf]
        %v632 = vld [vmem:[%s5 + $0x6c] sm:$0xf]
        %v633 = vld [vmem:[%s5 + $0x70] sm:$0xf]
        %v634 = vld [vmem:[%s5 + $0x74] sm:$0xf]
        %v635 = vld [vmem:[%s5 + $0x78] sm:$0xf]
        %v636 = vld [vmem:[%s5 + $0x7c] sm:$0xf]
        %v637 = vld [vmem:[%s6] sm:$0x1]
        %v639 = vlaneseq
        %v640 = vshrl.u32 %v639, 7
        %v641 = vsub.s32 0, %v640
        %v642 = vrot.slane %v637, %v641
        %v676 = vunpack.c.l.b16 %v605
        %v677 = vunpack.c.l.b16 %v606
        %v678 = vunpack.c.l.b16 %v607
        %v679 = vunpack.c.l.b16 %v608
        %v680 = vunpack.c.l.b16 %v609
        %v681 = vunpack.c.l.b16 %v610
        %v682 = vunpack.c.l.b16 %v611
        %v683 = vunpack.c.l.b16 %v612
        %v684 = vunpack.c.l.b16 %v613
        %v685 = vunpack.c.l.b16 %v614
        %v686 = vunpack.c.l.b16 %v615
        %v687 = vunpack.c.l.b16 %v616
        %v688 = vunpack.c.l.b16 %v617
        %v689 = vunpack.c.l.b16 %v618
        %v690 = vunpack.c.l.b16 %v619
        %v691 = vunpack.c.l.b16 %v620
        %v692 = vunpack.c.l.b16 %v621
        %v693 = vunpack.c.l.b16 %v622
        %v694 = vunpack.c.l.b16 %v623
        %v695 = vunpack.c.l.b16 %v624
        %v696 = vunpack.c.l.b16 %v625
        %v697 = vunpack.c.l.b16 %v626
        %v698 = vunpack.c.l.b16 %v627
        %v699 = vunpack.c.l.b16 %v628
        %v700 = vunpack.c.l.b16 %v629
        %v701 = vunpack.c.l.b16 %v630
        %v702 = vunpack.c.l.b16 %v631
        %v703 = vunpack.c.l.b16 %v632
        %v704 = vunpack.c.l.b16 %v633
        %v705 = vunpack.c.l.b16 %v634
        %v706 = vunpack.c.l.b16 %v635
        %v707 = vunpack.c.l.b16 %v636
        %v708 = vpack.c.b16 %v677, %v676
        %v709 = vpack.c.b16 %v679, %v678
        %v710 = vpack.c.b16 %v681, %v680
        %v711 = vpack.c.b16 %v683, %v682
        %v712 = vpack.c.b16 %v685, %v684
        %v713 = vpack.c.b16 %v687, %v686
        %v714 = vpack.c.b16 %v689, %v688
        %v715 = vpack.c.b16 %v691, %v690
        %v716 = vpack.c.b16 %v693, %v692
        %v717 = vpack.c.b16 %v695, %v694
        %v718 = vpack.c.b16 %v697, %v696
        %v719 = vpack.c.b16 %v699, %v698
        %v720 = vpack.c.b16 %v701, %v700
        %v721 = vpack.c.b16 %v703, %v702
        %v722 = vpack.c.b16 %v705, %v704
        %v723 = vpack.c.b16 %v707, %v706
        %740 = vmatprep.subr.bf16.mxu0 0
        %741 = vmatpush1.bf16.msra.mxu0 %v708
        %742 = vmatprep.subr.bf16.mxu0 0
        %743 = vmatpush1.bf16.msra.mxu0 %v709
        %744 = vmatprep.subr.bf16.mxu0 0
        %745 = vmatpush1.bf16.msra.mxu0 %v710
        %746 = vmatprep.subr.bf16.mxu0 0
        %747 = vmatpush1.bf16.msra.mxu0 %v711
        %748 = vmatprep.subr.bf16.mxu0 0
        %749 = vmatpush1.bf16.msra.mxu0 %v712
        %750 = vmatprep.subr.bf16.mxu0 0
        %751 = vmatpush1.bf16.msra.mxu0 %v713
        %752 = vmatprep.subr.bf16.mxu0 0
        %753 = vmatpush1.bf16.msra.mxu0 %v714
        %754 = vmatprep.subr.bf16.mxu0 0
        %755 = vmatpush1.bf16.msra.mxu0 %v715
        %756 = vmatprep.subr.bf16.mxu0 0
        %757 = vmatpush1.bf16.msra.mxu0 %v716
        %758 = vmatprep.subr.bf16.mxu0 0
        %759 = vmatpush1.bf16.msra.mxu0 %v717
        %760 = vmatprep.subr.bf16.mxu0 0
        %761 = vmatpush1.bf16.msra.mxu0 %v718
        %762 = vmatprep.subr.bf16.mxu0 0
        %763 = vmatpush1.bf16.msra.mxu0 %v719
        %764 = vmatprep.subr.bf16.mxu0 0
        %765 = vmatpush1.bf16.msra.mxu0 %v720
        %766 = vmatprep.subr.bf16.mxu0 0
        %767 = vmatpush1.bf16.msra.mxu0 %v721
        %768 = vmatprep.subr.bf16.mxu0 0
        %769 = vmatpush1.bf16.msra.mxu0 %v722
        %770 = vmatprep.subr.bf16.mxu0 0
        %771 = vmatpush1.bf16.msra.mxu0 %v723
        %772 = vmatprep.mubr.bf16.mxu0 %v602
        %773 = vmatmul.mubr.bf16.gmra.mrb[0].mxu0 %v601
        %v774 = vpop.f32.mrb[0].mxu0
        %v775 = vadd.f32 %v642, %v774
        %v776 = vpop.f32.mrb[0].mxu0
        %v777 = vpop.f32.mrb[0].mxu0
        %v778 = vadd.f32 %v642, %v777
        %v779 = vpop.f32.mrb[0].mxu0
        %780 = vmatprep.mubr.bf16.mxu0 %v604
        %781 = vmatmul.mubr.bf16.gmra.mrb[0].mxu0 %v603
        %v782 = vpop.f32.mrb[0].mxu0
        %v783 = vadd.f32 %v642, %v782
        %v784 = vpop.f32.mrb[0].mxu0
        %v785 = vpop.f32.mrb[0].mxu0
        %v786 = vadd.f32 %v642, %v785
        %v787 = vpop.f32.mrb[0].mxu0
        %788 = vdwg.mxu0
        %v789 = vtanh.pop %v775
        %v790 = vtanh.pop %v778
        %v791 = vtanh.pop %v783
        %v792 = vtanh.pop %v786
        %vm793 = vcmask 261120
        %794 = vst.msk [vmem:[%s280] sm:$0xff] %vm793, %v789
        %795 = vst.msk [vmem:[%s280 + $0x8] sm:$0xff] %vm793, %v790
        %796 = vst.msk [vmem:[%s280 + $0x10] sm:$0xff] %vm793, %v791
        %797 = vst.msk [vmem:[%s280 + $0x18] sm:$0xff] %vm793, %v792
        %s798 = sand.u32 %s178, 1
        %s799 = sand.u32 %s178, 1
        %s800 = smul.addr %s799, 32
        %s801 = scalar_lea.vmem [#allocation2], %s800
        // Predicated region
        $region49: #{gan_forward.1} parent=47 // pred_check
          %p802 = pneg %p188
        $region50: #{gan_forward.1} parent=47 // pred_check_branch
          %804 = sbr.rel (%p802) target = $region52
        $region51: #{gan_forward.1} parent=47 // pred_region
          %s805 = smul.u32 4, %s18
          %s806 = ssub.s32 7, %s805
          %p807 = scmp.lt.s32.totalorder %s806, 4
          %s808 = scalar_select %p807, %s806, 4
          %s809 = smul.u32 128, %s808
          %p810 = scmp.ne.s32.totalorder 0, %s809
          %s811 = smul.addr %s805, 8
          %s812 = scalar_lea.vmem %s7, %s811
          // Predicated region
          $region53: #{gan_forward.1} parent=51 // pred_check
            %p813 = pneg %p810
          $region54: #{gan_forward.1} parent=51 // pred_check_branch
            %815 = sbr.rel (%p813) target = $region56
          $region55: #{gan_forward.1} parent=51 // pred_region
            // Predicated region
            $region57: #{gan_forward.1} parent=55 // pred_check
              _
            $region58: #{gan_forward.1} parent=55 // pred_check_branch
              %817 = sbr.rel (0) target = $region60
            $region59: #{gan_forward.1} parent=55 // pred_region
              // Predicated region
              $region79: #{gan_forward.1} parent=59 // pred_check
                _
              $region80: #{gan_forward.1} parent=59 // pred_check_branch
                %872 = sbr.rel (0) target = $region82
              $region81: #{gan_forward.1} parent=59 // pred_region
                %s873 = sshrl.u32 %s808, 2
                // While loop
                $region83: #{gan_forward.1} parent=81 // loop_pre_header
                  _
                $region84: #{gan_forward.1} parent=81 // loop_header
                  %s875 = sphi 0, %s877
                  %p876 = scmp.ge.s32.totalorder %s875, %s873
                  %s880 = sphi 0, %s893
                  %s881 = sphi %s801, %s896
                  %s882 = sphi %s812, %s897
                $region85: #{gan_forward.1} parent=81 // loop_header_branch
                  %879 = sbr.rel (%p876) target = $region89
                $region86: #{gan_forward.1} parent=81 // loop_body
                  %v883 = vld [vmem:[%s881] sm:$0xff]
                  %884 = vst [vmem:[%s882] sm:$0xff] %v883
                  %v885 = vld [vmem:[%s881 + $0x8] sm:$0xff]
                  %886 = vst [vmem:[%s882 + $0x8] sm:$0xff] %v885
                  %v887 = vld [vmem:[%s881 + $0x10] sm:$0xff]
                  %888 = vst [vmem:[%s882 + $0x10] sm:$0xff] %v887
                  %v889 = vld [vmem:[%s881 + $0x18] sm:$0xff]
                  %890 = vst [vmem:[%s882 + $0x18] sm:$0xff] %v889
                  %s891 = sadd.s32 1, %s880
                  %p892 = scmp.ge.s32.totalorder %s891, %s873
                  %s893 = scalar_select %p892, 0, %s891
                  %s894 = smul.u32 %s893, 32
                  %s895 = smul.u32 %s893, 32
                  %s896 = scalar_lea.vmem %s801, %s894 [#allocation2]
                  %s897 = scalar_lea.vmem %s812, %s895
                $region87: #{gan_forward.1} parent=81 // loop_footer
                  %s877 = sadd.s32 %s875, 1
                $region88: #{gan_forward.1} parent=81 // loop_footer_branch
                  %874 = sbr.rel target = $region84
                $region89: #{gan_forward.1} parent=81 // loop_exit
                  _
                %s898 = sshrl.u32 %s808, 2
                %s899 = sand.u32 %s808, 3
                %s900 = smul.u32 %s898, 4
                %s901 = smul.u32 8, %s900
                %s902 = scalar_lea.vmem %s801, %s901 [#allocation2]
                %s903 = smul.u32 8, %s900
                %s904 = scalar_lea.vmem %s812, %s903
                // While loop
                $region90: #{gan_forward.1} parent=81 // loop_pre_header
                  _
                $region91: #{gan_forward.1} parent=81 // loop_header
                  %s906 = sphi 0, %s908
                  %p907 = scmp.ge.s32.totalorder %s906, %s899
                  %s911 = sphi 0, %s918
                  %s912 = sphi %s902, %s921
                  %s913 = sphi %s904, %s922
                $region92: #{gan_forward.1} parent=81 // loop_header_branch
                  %910 = sbr.rel (%p907) target = $region96
                $region93: #{gan_forward.1} parent=81 // loop_body
                  %v914 = vld [vmem:[%s912] sm:$0xff]
                  %915 = vst [vmem:[%s913] sm:$0xff] %v914
                  %s916 = sadd.s32 1, %s911
                  %p917 = scmp.ge.s32.totalorder %s916, %s899
                  %s918 = scalar_select %p917, 0, %s916
                  %s919 = smul.u32 %s918, 8
                  %s920 = smul.u32 %s918, 8
                  %s921 = scalar_lea.vmem %s902, %s919 [#allocation2]
                  %s922 = scalar_lea.vmem %s904, %s920
                $region94: #{gan_forward.1} parent=81 // loop_footer
                  %s908 = sadd.s32 %s906, 1
                $region95: #{gan_forward.1} parent=81 // loop_footer_branch
                  %905 = sbr.rel target = $region91
                $region96: #{gan_forward.1} parent=81 // loop_exit
                  _
              $region82: #{gan_forward.1} parent=59 // pred_fallthru
                _
              // Predicated region
              $region97: #{gan_forward.1} parent=59 // pred_check
                _
              $region98: #{gan_forward.1} parent=59 // pred_check_branch
                %924 = sbr.rel target = $region100
              $region99: #{gan_forward.1} parent=59 // pred_region
                _
              $region100: #{gan_forward.1} parent=59 // pred_fallthru
                _
            $region60: #{gan_forward.1} parent=55 // pred_fallthru
              _
            // Predicated region
            $region61: #{gan_forward.1} parent=55 // pred_check
              _
            $region62: #{gan_forward.1} parent=55 // pred_check_branch
              %819 = sbr.rel target = $region64
            $region63: #{gan_forward.1} parent=55 // pred_region
              %s821 = sshrl.u32 %s808, 2
              // While loop
              $region65: #{gan_forward.1} parent=63 // loop_pre_header
                _
              $region66: #{gan_forward.1} parent=63 // loop_header
                %s823 = sphi 0, %s825
                %p824 = scmp.ge.s32.totalorder %s823, %s821
                %s828 = sphi 0, %s841
                %s829 = sphi %s801, %s844
                %s830 = sphi %s812, %s845
              $region67: #{gan_forward.1} parent=63 // loop_header_branch
                %827 = sbr.rel (%p824) target = $region71
              $region68: #{gan_forward.1} parent=63 // loop_body
                %v831 = vld [vmem:[%s829] sm:$0xff]
                %832 = vst [vmem:[%s830] sm:$0xff] %v831
                %v833 = vld [vmem:[%s829 + $0x8] sm:$0xff]
                %834 = vst [vmem:[%s830 + $0x8] sm:$0xff] %v833
                %v835 = vld [vmem:[%s829 + $0x10] sm:$0xff]
                %836 = vst [vmem:[%s830 + $0x10] sm:$0xff] %v835
                %v837 = vld [vmem:[%s829 + $0x18] sm:$0xff]
                %838 = vst [vmem:[%s830 + $0x18] sm:$0xff] %v837
                %s839 = sadd.s32 1, %s828
                %p840 = scmp.ge.s32.totalorder %s839, %s821
                %s841 = scalar_select %p840, 0, %s839
                %s842 = smul.u32 %s841, 32
                %s843 = smul.u32 %s841, 32
                %s844 = scalar_lea.vmem %s801, %s842 [#allocation2]
                %s845 = scalar_lea.vmem %s812, %s843
              $region69: #{gan_forward.1} parent=63 // loop_footer
                %s825 = sadd.s32 %s823, 1
              $region70: #{gan_forward.1} parent=63 // loop_footer_branch
                %822 = sbr.rel target = $region66
              $region71: #{gan_forward.1} parent=63 // loop_exit
                _
              %s846 = sshrl.u32 %s808, 2
              %s847 = sand.u32 %s808, 3
              %s848 = smul.u32 %s846, 4
              %s849 = smul.u32 8, %s848
              %s850 = scalar_lea.vmem %s801, %s849 [#allocation2]
              %s851 = smul.u32 8, %s848
              %s852 = scalar_lea.vmem %s812, %s851
              // While loop
              $region72: #{gan_forward.1} parent=63 // loop_pre_header
                _
              $region73: #{gan_forward.1} parent=63 // loop_header
                %s854 = sphi 0, %s856
                %p855 = scmp.ge.s32.totalorder %s854, %s847
                %s859 = sphi 0, %s866
                %s860 = sphi %s850, %s869
                %s861 = sphi %s852, %s870
              $region74: #{gan_forward.1} parent=63 // loop_header_branch
                %858 = sbr.rel (%p855) target = $region78
              $region75: #{gan_forward.1} parent=63 // loop_body
                %v862 = vld [vmem:[%s860] sm:$0xff]
                %863 = vst [vmem:[%s861] sm:$0xff] %v862
                %s864 = sadd.s32 1, %s859
                %p865 = scmp.ge.s32.totalorder %s864, %s847
                %s866 = scalar_select %p865, 0, %s864
                %s867 = smul.u32 %s866, 8
                %s868 = smul.u32 %s866, 8
                %s869 = scalar_lea.vmem %s850, %s867 [#allocation2]
                %s870 = scalar_lea.vmem %s852, %s868
              $region76: #{gan_forward.1} parent=63 // loop_footer
                %s856 = sadd.s32 %s854, 1
              $region77: #{gan_forward.1} parent=63 // loop_footer_branch
                %853 = sbr.rel target = $region73
              $region78: #{gan_forward.1} parent=63 // loop_exit
                _
            $region64: #{gan_forward.1} parent=55 // pred_fallthru
              _
          $region56: #{gan_forward.1} parent=51 // pred_fallthru
            _
          %925 = vnop
        $region52: #{gan_forward.1} parent=47 // pred_fallthru
          _
      $region48: #{gan_forward.1} parent=5 // pred_fallthru
        _
      %p926 = scmp.le.s32.totalorder 2, %s13
      // Predicated region
      $region101: #{gan_forward.1} parent=5 // pred_check
        %p927 = pneg %p926
      $region102: #{gan_forward.1} parent=5 // pred_check_branch
        %929 = sbr.rel (%p927) target = $region104
      $region103: #{gan_forward.1} parent=5 // pred_region
        %s930 = ssub.s32 %s13, 2
        // Predicated region
        $region105: #{gan_forward.1} parent=103 // pred_check
          %p931 = pneg %p194
        $region106: #{gan_forward.1} parent=103 // pred_check_branch
          %933 = sbr.rel (%p931) target = $region108
        $region107: #{gan_forward.1} parent=103 // pred_region
          %s934 = sand.u32 %s179, 1
          %s935 = sand.u32 %s179, 1
          %s936 = smul.addr %s935, 32
          %s937 = scalar_lea.vmem [#allocation2], %s936
        $region108: #{gan_forward.1} parent=103 // pred_fallthru
          _
      $region104: #{gan_forward.1} parent=5 // pred_fallthru
        _
    $region6: #{gan_forward.1} parent=1 // loop_footer
      %s17 = sadd.s32 1, %s13
    $region7: #{gan_forward.1} parent=1 // loop_footer_branch
      %12 = sbr.rel target = $region3
    $region8: #{gan_forward.1} parent=1 // loop_exit
      _

</llo_original>
